<compile_context>
chip_gen: v6e
topology: v6e:2x2x1
jax: 0.10.0
libtpu: 0.0.40
codegen_flags: <defaults>
</compile_context>

<pallas_src>
import functools

import jax
import jax.numpy as jnp
from jax.experimental import pallas as pl
from jax.experimental.pallas import tpu as pltpu

IN_DIM = 2
NUM_FREQ = 10
ENC_DIM = IN_DIM + IN_DIM * NUM_FREQ   # 22
HIDDEN = 128
OUT_DIM = 3


def _mlp_pe_kernel(x_ref, freq_ref, w1_ref, b1_ref, w2_ref, b2_ref, o_ref):
    # x_ref:  (2, TM)        freq_ref: (10, 1) = 2^i
    # w1_ref: (128, 22)      packed column order:
    #                        [sin(x0*2^0..2^9), sin(x1*2^0..2^9), x0, x1]
    # b1_ref: (128, 1)       w2_ref: (3, 128)   b2_ref: (3, 1)
    # o_ref:  (3, TM)
    x = x_ref[...]
    freqs = freq_ref[...]                      # (10, 1)

    x0 = x[0:1, :]                             # (1, TM)
    x1 = x[1:2, :]                             # (1, TM)

    # Packed positional-encoding argument: one (20, TM) sin instead of two
    # (10, TM) halves (less sublane padding on the EUP/VPU).
    arg = jnp.concatenate([x0 * freqs, x1 * freqs], axis=0)   # (20, TM)
    s = jnp.sin(arg)                                          # (20, TM)

    # Full 22-row encoding: sin rows first (sublane-0 aligned), raw coords last.
    enc = jnp.concatenate([s, x], axis=0)                     # (22, TM)

    # fc1 as a single fused K=22 MXU matmul (K pads to 24 sublanes; the two
    # raw-coordinate rows are free), then bias + ReLU.
    h = jnp.dot(w1_ref[...], enc, preferred_element_type=jnp.float32)
    h = jnp.maximum(h + b1_ref[...], 0.0)                     # (128, TM)

    # fc2 + sigmoid (tanh form: single EUP transcendental).
    y = jnp.dot(w2_ref[...], h, preferred_element_type=jnp.float32)
    y = y + b2_ref[...]
    o_ref[...] = (0.5 * (jnp.tanh(0.5 * y) + 1.0)).astype(o_ref.dtype)


def _round_up(x, m):
    return ((x + m - 1) // m) * m


def _pick_tiling(n, tile_m):
    """Row tile (lane dim, multiple of 128) and grid length.

    Keeps >= 2 grid steps when n allows, and keeps the step count EVEN so
    v7x's two TensorCores split the 'parallel' axis without a tail step.
    """
    tm_cap = min(tile_m, max(128, _round_up(pl.cdiv(n, 2), 128)))
    steps = pl.cdiv(n, tm_cap)
    if steps > 1 and steps % 2 == 1:
        steps += 1
    tm = max(128, _round_up(pl.cdiv(n, steps), 128))
    return tm, steps


@functools.partial(jax.jit, static_argnames=("tile_m",))
def mlp_positional_forward_cf(x_cf, w1, b1, w2, b2, *, tile_m=8192):
    """Channels-first entry point (no layout copies).

    x_cf: (2, N) f32.  w1: (128, 22), b1: (128,), w2: (3, 128), b2: (3,)
    (PyTorch nn.Linear layout).  Returns (3, N) f32.
    """
    n = x_cf.shape[1]
    tm, steps = _pick_tiling(n, tile_m)
    n_pad = tm * steps
    if n_pad != n:
        x_cf = jnp.pad(x_cf, ((0, 0), (0, n_pad - n)))

    # Repack fc1 columns to match the in-kernel encoding row order.
    # PyTorch enc column order: [x0, x1, sin(x0*2^0), sin(x1*2^0),
    #                            sin(x0*2^1), sin(x1*2^1), ...]
    # Kernel enc row order:     [sin(x0*2^0..2^9), sin(x1*2^0..2^9), x0, x1]
    w1_packed = jnp.concatenate(
        [w1[:, IN_DIM + 0::2],     # sin(x0 * 2^i), i = 0..9
         w1[:, IN_DIM + 1::2],     # sin(x1 * 2^i), i = 0..9
         w1[:, :IN_DIM]],          # raw x0, x1
        axis=1)                    # (128, 22)
    b1c = b1.reshape(HIDDEN, 1)
    b2c = b2.reshape(OUT_DIM, 1)
    freqs = (2.0 ** jnp.arange(NUM_FREQ, dtype=jnp.float32)).reshape(NUM_FREQ, 1)

    out = pl.pallas_call(
        _mlp_pe_kernel,
        out_shape=jax.ShapeDtypeStruct((OUT_DIM, n_pad), jnp.float32),
        grid_spec=pltpu.PrefetchScalarGridSpec(
            num_scalar_prefetch=0,
            grid=(steps,),
            in_specs=[
                pl.BlockSpec((IN_DIM, tm), lambda i: (0, i)),
                pl.BlockSpec((NUM_FREQ, 1), lambda i: (0, 0)),
                pl.BlockSpec((HIDDEN, ENC_DIM), lambda i: (0, 0)),
                pl.BlockSpec((HIDDEN, 1), lambda i: (0, 0)),
                pl.BlockSpec((OUT_DIM, HIDDEN), lambda i: (0, 0)),
                pl.BlockSpec((OUT_DIM, 1), lambda i: (0, 0)),
            ],
            out_specs=pl.BlockSpec((OUT_DIM, tm), lambda i: (0, i)),
        ),
        compiler_params=pltpu.CompilerParams(
            dimension_semantics=("parallel",),
        ),
    )(x_cf, freqs, w1_packed, b1c, w2, b2c)

    return out[:, :n] if n_pad != n else out


@functools.partial(jax.jit, static_argnames=("tile_m",))
def mlp_positional_forward(x, w1, b1, w2, b2, *, tile_m=8192):
    """PyTorch-layout compatibility wrapper: x (N, 2) -> (N, 3).

    Adds two layout transposes around the channels-first kernel; callers that
    can hold coordinates channels-first should use mlp_positional_forward_cf
    directly (saves ~40 B/row of extra HBM traffic, biggest win on v5e).
    """
    return mlp_positional_forward_cf(x.T, w1, b1, w2, b2, tile_m=tile_m).T


def init_params(key):
    """torch.nn.Linear-style init: U(-1/sqrt(fan_in), +1/sqrt(fan_in))."""
    k1, k2, k3, k4 = jax.random.split(key, 4)
    bound1 = 1.0 / (ENC_DIM ** 0.5)
    bound2 = 1.0 / (HIDDEN ** 0.5)
    w1 = jax.random.uniform(k1, (HIDDEN, ENC_DIM), jnp.float32, -bound1, bound1)
    b1 = jax.random.uniform(k2, (HIDDEN,), jnp.float32, -bound1, bound1)
    w2 = jax.random.uniform(k3, (OUT_DIM, HIDDEN), jnp.float32, -bound2, bound2)
    b2 = jax.random.uniform(k4, (OUT_DIM,), jnp.float32, -bound2, bound2)
    return w1, b1, w2, b2


def reference_forward(x, w1, b1, w2, b2):
    """Pure-JAX forward faithful to the PyTorch module (fc1 in_features=22)."""
    pe = jnp.concatenate([jnp.sin(x * (2.0 ** i)) for i in range(NUM_FREQ)],
                         axis=-1)                       # (N, 20)
    enc = jnp.concatenate([x, pe], axis=-1)             # (N, 22)
    h = jnp.maximum(enc @ w1.T + b1, 0.0)
    return jax.nn.sigmoid(h @ w2.T + b2)


if __name__ == "__main__":
    key = jax.random.PRNGKey(0)
    pkey, xkey = jax.random.split(key)

    w1, b1, w2, b2 = init_params(pkey)

    # Small batch of normalized (y, x) pixel coordinates; n deliberately not a
    # multiple of the row tile so the padding / even-grid path is exercised.
    n = 200
    x = jax.random.uniform(xkey, (n, IN_DIM), jnp.float32)

    ref = reference_forward(x, w1, b1, w2, b2)

    # PyTorch-layout entry point.
    out = mlp_positional_forward(x, w1, b1, w2, b2)
    out = jax.block_until_ready(out)
    assert out.shape == (n, OUT_DIM)
    assert jnp.allclose(out, ref, atol=1e-3, rtol=0), \
        float(jnp.max(jnp.abs(out - ref)))

    # Channels-first entry point (no layout copies) agrees as well.
    out_cf = mlp_positional_forward_cf(x.T, w1, b1, w2, b2)
    out_cf = jax.block_until_ready(out_cf)
    assert out_cf.shape == (OUT_DIM, n)
    assert jnp.allclose(out_cf.T, ref, atol=1e-3, rtol=0), \
        float(jnp.max(jnp.abs(out_cf.T - ref)))

    print("KERNEL_OK")
</pallas_src>

<mosaic_0001>
module attributes {stable_mosaic.version = 11 : i64} {
  func.func @_mlp_pe_kernel(%arg0: i32, %arg1: memref<2x128xf32, #tpu.memory_space<vmem>>, %arg2: memref<10x1xf32, #tpu.memory_space<vmem>>, %arg3: memref<128x22xf32, #tpu.memory_space<vmem>>, %arg4: memref<128x1xf32, #tpu.memory_space<vmem>>, %arg5: memref<3x128xf32, #tpu.memory_space<vmem>>, %arg6: memref<3x1xf32, #tpu.memory_space<vmem>>, %arg7: memref<3x128xf32, #tpu.memory_space<vmem>>) attributes {dimension_semantics = [#tpu.dimension_semantics<parallel>], iteration_bounds = array<i64: 2>, scalar_prefetch = 0 : i64, scratch_operands = 0 : i64, tpu.core_type = #tpu.core_type<tc>, window_params = [{transform_indices = @transform_0, window_bounds = array<i64: 2, 128>}, {pipeline_mode = #tpu.pipeline_mode<synchronous>, transform_indices = @transform_1, window_bounds = array<i64: 10, 1>}, {pipeline_mode = #tpu.pipeline_mode<synchronous>, transform_indices = @transform_2, window_bounds = array<i64: 128, 22>}, {pipeline_mode = #tpu.pipeline_mode<synchronous>, transform_indices = @transform_3, window_bounds = array<i64: 128, 1>}, {pipeline_mode = #tpu.pipeline_mode<synchronous>, transform_indices = @transform_4, window_bounds = array<i64: 3, 128>}, {pipeline_mode = #tpu.pipeline_mode<synchronous>, transform_indices = @transform_5, window_bounds = array<i64: 3, 1>}, {transform_indices = @transform_6, window_bounds = array<i64: 3, 128>}]} {
    %c0 = arith.constant 0 : index
    %c0_0 = arith.constant 0 : index
    %0 = vector.load %arg1[%c0, %c0_0] : memref<2x128xf32, #tpu.memory_space<vmem>>, vector<2x128xf32>
    %c0_1 = arith.constant 0 : index
    %c0_2 = arith.constant 0 : index
    %1 = vector.load %arg2[%c0_1, %c0_2] : memref<10x1xf32, #tpu.memory_space<vmem>>, vector<10x1xf32>
    %2 = vector.extract_strided_slice %0 {offsets = [0, 0], sizes = [1, 128], strides = [1, 1]} : vector<2x128xf32> to vector<1x128xf32>
    %3 = vector.extract_strided_slice %0 {offsets = [1, 0], sizes = [1, 128], strides = [1, 1]} : vector<2x128xf32> to vector<1x128xf32>
    %4 = vector.broadcast %2 : vector<1x128xf32> to vector<10x128xf32>
    %5 = vector.broadcast %1 : vector<10x1xf32> to vector<10x128xf32>
    %6 = arith.mulf %4, %5 : vector<10x128xf32>
    %7 = vector.broadcast %3 : vector<1x128xf32> to vector<10x128xf32>
    %8 = vector.broadcast %1 : vector<10x1xf32> to vector<10x128xf32>
    %9 = arith.mulf %7, %8 : vector<10x128xf32>
    %10 = tpu.concatenate %6, %9 in 0 : vector<10x128xf32>, vector<10x128xf32> -> vector<20x128xf32>
    %11 = math.sin %10 : vector<20x128xf32>
    %12 = tpu.concatenate %11, %0 in 0 : vector<20x128xf32>, vector<2x128xf32> -> vector<22x128xf32>
    %c0_3 = arith.constant 0 : index
    %c0_4 = arith.constant 0 : index
    %13 = vector.load %arg3[%c0_3, %c0_4] : memref<128x22xf32, #tpu.memory_space<vmem>>, vector<128x22xf32>
    %cst = arith.constant dense<0.000000e+00> : vector<128x128xf32>
    %14 = tpu.matmul %13, %12, %cst {dimension_numbers = #tpu.dot_dimension_numbers<[1], [0], [0], [1], [0, 0, 1, 1], [], []>} : vector<128x22xf32>, vector<22x128xf32>, vector<128x128xf32> -> vector<128x128xf32>
    %c0_5 = arith.constant 0 : index
    %c0_6 = arith.constant 0 : index
    %15 = vector.load %arg4[%c0_5, %c0_6] : memref<128x1xf32, #tpu.memory_space<vmem>>, vector<128x1xf32>
    %16 = vector.broadcast %15 : vector<128x1xf32> to vector<128x128xf32>
    %17 = arith.addf %14, %16 : vector<128x128xf32>
    %cst_7 = arith.constant 0.000000e+00 : f32
    %18 = vector.broadcast %cst_7 : f32 to vector<128x128xf32>
    %19 = arith.maximumf %17, %18 : vector<128x128xf32>
    %c0_8 = arith.constant 0 : index
    %c0_9 = arith.constant 0 : index
    %20 = vector.load %arg5[%c0_8, %c0_9] : memref<3x128xf32, #tpu.memory_space<vmem>>, vector<3x128xf32>
    %cst_10 = arith.constant dense<0.000000e+00> : vector<3x128xf32>
    %21 = tpu.matmul %20, %19, %cst_10 {dimension_numbers = #tpu.dot_dimension_numbers<[1], [0], [0], [1], [0, 0, 1, 1], [], []>} : vector<3x128xf32>, vector<128x128xf32>, vector<3x128xf32> -> vector<3x128xf32>
    %c0_11 = arith.constant 0 : index
    %c0_12 = arith.constant 0 : index
    %22 = vector.load %arg6[%c0_11, %c0_12] : memref<3x1xf32, #tpu.memory_space<vmem>>, vector<3x1xf32>
    %23 = vector.broadcast %22 : vector<3x1xf32> to vector<3x128xf32>
    %24 = arith.addf %21, %23 : vector<3x128xf32>
    %cst_13 = arith.constant 5.000000e-01 : f32
    %25 = vector.broadcast %cst_13 : f32 to vector<3x128xf32>
    %26 = arith.mulf %25, %24 : vector<3x128xf32>
    %27 = math.tanh %26 : vector<3x128xf32>
    %cst_14 = arith.constant 1.000000e+00 : f32
    %28 = vector.broadcast %cst_14 : f32 to vector<3x128xf32>
    %29 = arith.addf %27, %28 : vector<3x128xf32>
    %cst_15 = arith.constant 5.000000e-01 : f32
    %30 = vector.broadcast %cst_15 : f32 to vector<3x128xf32>
    %31 = arith.mulf %30, %29 : vector<3x128xf32>
    %c0_16 = arith.constant 0 : index
    %c0_17 = arith.constant 0 : index
    %32 = vector.load %arg7[%c0_16, %c0_17] : memref<3x128xf32, #tpu.memory_space<vmem>>, vector<3x128xf32>
    tpu.vector_store %arg7[%c0_16, %c0_17], %31 {strides = array<i32>} : memref<3x128xf32, #tpu.memory_space<vmem>>, vector<3x128xf32>,
    return
  }
  func.func @transform_0(%arg0: i32) -> (i32, i32) {
    %c0_i32 = arith.constant 0 : i32
    %c0_i32_0 = arith.constant 0 : i32
    return %c0_i32, %arg0 : i32, i32
  }
  func.func @transform_1(%arg0: i32) -> (i32, i32) {
    %c0_i32 = arith.constant 0 : i32
    %c0_i32_0 = arith.constant 0 : i32
    %c0_i32_1 = arith.constant 0 : i32
    return %c0_i32, %c0_i32_0 : i32, i32
  }
  func.func @transform_2(%arg0: i32) -> (i32, i32) {
    %c0_i32 = arith.constant 0 : i32
    %c0_i32_0 = arith.constant 0 : i32
    %c0_i32_1 = arith.constant 0 : i32
    return %c0_i32, %c0_i32_0 : i32, i32
  }
  func.func @transform_3(%arg0: i32) -> (i32, i32) {
    %c0_i32 = arith.constant 0 : i32
    %c0_i32_0 = arith.constant 0 : i32
    %c0_i32_1 = arith.constant 0 : i32
    return %c0_i32, %c0_i32_0 : i32, i32
  }
  func.func @transform_4(%arg0: i32) -> (i32, i32) {
    %c0_i32 = arith.constant 0 : i32
    %c0_i32_0 = arith.constant 0 : i32
    %c0_i32_1 = arith.constant 0 : i32
    return %c0_i32, %c0_i32_0 : i32, i32
  }
  func.func @transform_5(%arg0: i32) -> (i32, i32) {
    %c0_i32 = arith.constant 0 : i32
    %c0_i32_0 = arith.constant 0 : i32
    %c0_i32_1 = arith.constant 0 : i32
    return %c0_i32, %c0_i32_0 : i32, i32
  }
  func.func @transform_6(%arg0: i32) -> (i32, i32) {
    %c0_i32 = arith.constant 0 : i32
    %c0_i32_0 = arith.constant 0 : i32
    return %c0_i32, %arg0 : i32, i32
  }
}

</mosaic_0001>

<llo_original>
// kernel: mlp_positional_forward_cf.1
$region0: #{mlp_positional_forward_cf.1}
  #allocation0 [shape = 'u32[]', space=smem, size = 0x4, offset = 0x4, fixed_abs, tag = 'smem constant byte address 0x4 - core index']
  #allocation1 [shape = 'u32[144,128]{1,0:T(1,128)}', space=vmem, size = 0x12000, scoped, tag = 'internal scratch']
  %s0 = inlined_call_operand.vmem [shape: f32[2,256], index: 0, kind: input, shape index: {}]
  %s1 = inlined_call_operand.vmem [shape: f32[10,1], index: 1, kind: input, shape index: {}]
  %s2 = inlined_call_operand.vmem [shape: f32[128,22], index: 2, kind: input, shape index: {}]
  %s3 = inlined_call_operand.vmem [shape: f32[128,1], index: 3, kind: input, shape index: {}]
  %s4 = inlined_call_operand.vmem [shape: f32[3,128], index: 4, kind: input, shape index: {}]
  %s5 = inlined_call_operand.vmem [shape: f32[3,1], index: 5, kind: input, shape index: {}]
  %s6 = inlined_call_operand.hbm [shape: f32[3,256], index: 6, kind: output, shape index: {}]
  %s7 = sld [smem:[#allocation0]]
  $region57: #{mlp_positional_forward_cf.1} parent=0
    _
  %s9 = ssub.s32 1, %s7
  %s10 = scalar_select 0, %s9, %s7
  $region1: #{mlp_positional_forward_cf.1} parent=0
    #allocation2 [shape = 'u8[4096]{0}', space=vmem, size = 0x1000, scoped, tag = 'output window, operand 0']
    #allocation3 [shape = 's32[2]{0}', space=sflag, size = 0x8, scoped, tag = 'scoped memory for mlp_positional_forward_cf.1']
    %11 = vsyncpa [#allocation3], 0
    %s12 = scalar_lea.sflag [#allocation3], 1
    %13 = vsyncpa %s12, 0
    loop: start=0, step=1, limit=4
    $region2: #{mlp_positional_forward_cf.1} parent=1 // loop_pre_header
      _
    $region3: #{mlp_positional_forward_cf.1} parent=1 // loop_header
      %s15 = sphi 0, %s19
      %p16 = scmp.ge.s32.totalorder %s15, 4
      %s25 = sphi 0, %s27
      %s28 = sphi 0, %s25
      %s29 = sphi 0, %s28
      %s45 = sphi 0, %s29
      %s49 = sphi 0, %s49
      %s51 = sphi 0, %s49
      %s52 = sphi 0, %s51
      %s66 = sphi 0, %s52
      %s70 = sphi 0, %s70
      %s72 = sphi 0, %s70
      %s73 = sphi 0, %s72
      %s87 = sphi 0, %s73
      %s91 = sphi 0, %s91
      %s93 = sphi 0, %s91
      %s94 = sphi 0, %s93
      %s108 = sphi 0, %s94
      %s112 = sphi 0, %s112
      %s114 = sphi 0, %s112
      %s115 = sphi 0, %s114
      %s129 = sphi 0, %s115
      %s133 = sphi 0, %s133
      %s135 = sphi 0, %s133
      %s136 = sphi 0, %s135
      %s150 = sphi 0, %s136
      %s156 = sphi 0, %s158
      %s159 = sphi 0, %s156
      %s160 = sphi 0, %s159
      %s176 = sphi 0, %s160
    $region4: #{mlp_positional_forward_cf.1} parent=1 // loop_header_branch
      %18 = sbr.rel (%p16) target = $region8
    $region5: #{mlp_positional_forward_cf.1} parent=1 // loop_body
      %s20 = ssub.s32 %s15, 1
      %s21 = ssub.s32 %s15, 2
      %s22 = sadd.s32 %s15, 1
      %s23 = ssub.s32 %s15, %s22
      %p24 = scmp.eq.s32.totalorder %s23, 0
      %s26 = sadd.s32 %s25, 1
      %s27 = scalar_select %p24, %s25, %s26
      %p30 = pneg %p24
      %p31 = scmp.eq.s32.totalorder %s15, 1
      %p32 = por %p30, %p31
      %p33 = scmp.ne.s32.totalorder %s25, %s28
      %p34 = scmp.eq.s32.totalorder %s15, 0
      %p35 = por %p33, %p34
      %p36 = scmp.ne.s32.totalorder %s25, %s28
      %p37 = scmp.eq.s32.totalorder %s20, 1
      %p38 = por %p36, %p37
      %p39 = scmp.ne.s32.totalorder %s28, %s29
      %p40 = scmp.eq.s32.totalorder %s20, 0
      %p41 = por %p39, %p40
      %p42 = scmp.ne.s32.totalorder %s28, %s29
      %p43 = scmp.eq.s32.totalorder %s21, 1
      %p44 = por %p42, %p43
      %p46 = scmp.ne.s32.totalorder %s29, %s45
      %p47 = scmp.eq.s32.totalorder %s21, 0
      %p48 = por %p46, %p47
      %s50 = sadd.s32 %s49, 1
      %p53 = scmp.eq.s32.totalorder %s15, 1
      %p54 = scmp.ne.s32.totalorder %s49, %s51
      %p55 = scmp.eq.s32.totalorder %s15, 0
      %p56 = por %p54, %p55
      %p57 = scmp.ne.s32.totalorder %s49, %s51
      %p58 = scmp.eq.s32.totalorder %s20, 1
      %p59 = por %p57, %p58
      %p60 = scmp.ne.s32.totalorder %s51, %s52
      %p61 = scmp.eq.s32.totalorder %s20, 0
      %p62 = por %p60, %p61
      %p63 = scmp.ne.s32.totalorder %s51, %s52
      %p64 = scmp.eq.s32.totalorder %s21, 1
      %p65 = por %p63, %p64
      %p67 = scmp.ne.s32.totalorder %s52, %s66
      %p68 = scmp.eq.s32.totalorder %s21, 0
      %p69 = por %p67, %p68
      %s71 = sadd.s32 %s70, 1
      %p74 = scmp.eq.s32.totalorder %s15, 1
      %p75 = scmp.ne.s32.totalorder %s70, %s72
      %p76 = scmp.eq.s32.totalorder %s15, 0
      %p77 = por %p75, %p76
      %p78 = scmp.ne.s32.totalorder %s70, %s72
      %p79 = scmp.eq.s32.totalorder %s20, 1
      %p80 = por %p78, %p79
      %p81 = scmp.ne.s32.totalorder %s72, %s73
      %p82 = scmp.eq.s32.totalorder %s20, 0
      %p83 = por %p81, %p82
      %p84 = scmp.ne.s32.totalorder %s72, %s73
      %p85 = scmp.eq.s32.totalorder %s21, 1
      %p86 = por %p84, %p85
      %p88 = scmp.ne.s32.totalorder %s73, %s87
      %p89 = scmp.eq.s32.totalorder %s21, 0
      %p90 = por %p88, %p89
      %s92 = sadd.s32 %s91, 1
      %p95 = scmp.eq.s32.totalorder %s15, 1
      %p96 = scmp.ne.s32.totalorder %s91, %s93
      %p97 = scmp.eq.s32.totalorder %s15, 0
      %p98 = por %p96, %p97
      %p99 = scmp.ne.s32.totalorder %s91, %s93
      %p100 = scmp.eq.s32.totalorder %s20, 1
      %p101 = por %p99, %p100
      %p102 = scmp.ne.s32.totalorder %s93, %s94
      %p103 = scmp.eq.s32.totalorder %s20, 0
      %p104 = por %p102, %p103
      %p105 = scmp.ne.s32.totalorder %s93, %s94
      %p106 = scmp.eq.s32.totalorder %s21, 1
      %p107 = por %p105, %p106
      %p109 = scmp.ne.s32.totalorder %s94, %s108
      %p110 = scmp.eq.s32.totalorder %s21, 0
      %p111 = por %p109, %p110
      %s113 = sadd.s32 %s112, 1
      %p116 = scmp.eq.s32.totalorder %s15, 1
      %p117 = scmp.ne.s32.totalorder %s112, %s114
      %p118 = scmp.eq.s32.totalorder %s15, 0
      %p119 = por %p117, %p118
      %p120 = scmp.ne.s32.totalorder %s112, %s114
      %p121 = scmp.eq.s32.totalorder %s20, 1
      %p122 = por %p120, %p121
      %p123 = scmp.ne.s32.totalorder %s114, %s115
      %p124 = scmp.eq.s32.totalorder %s20, 0
      %p125 = por %p123, %p124
      %p126 = scmp.ne.s32.totalorder %s114, %s115
      %p127 = scmp.eq.s32.totalorder %s21, 1
      %p128 = por %p126, %p127
      %p130 = scmp.ne.s32.totalorder %s115, %s129
      %p131 = scmp.eq.s32.totalorder %s21, 0
      %p132 = por %p130, %p131
      %s134 = sadd.s32 %s133, 1
      %p137 = scmp.eq.s32.totalorder %s15, 1
      %p138 = scmp.ne.s32.totalorder %s133, %s135
      %p139 = scmp.eq.s32.totalorder %s15, 0
      %p140 = por %p138, %p139
      %p141 = scmp.ne.s32.totalorder %s133, %s135
      %p142 = scmp.eq.s32.totalorder %s20, 1
      %p143 = por %p141, %p142
      %p144 = scmp.ne.s32.totalorder %s135, %s136
      %p145 = scmp.eq.s32.totalorder %s20, 0
      %p146 = por %p144, %p145
      %p147 = scmp.ne.s32.totalorder %s135, %s136
      %p148 = scmp.eq.s32.totalorder %s21, 1
      %p149 = por %p147, %p148
      %p151 = scmp.ne.s32.totalorder %s136, %s150
      %p152 = scmp.eq.s32.totalorder %s21, 0
      %p153 = por %p151, %p152
      %s154 = ssub.s32 %s15, %s22
      %p155 = scmp.eq.s32.totalorder %s154, 0
      %s157 = sadd.s32 %s156, 1
      %s158 = scalar_select %p155, %s156, %s157
      %p161 = pneg %p155
      %p162 = scmp.eq.s32.totalorder %s15, 1
      %p163 = por %p161, %p162
      %p164 = scmp.ne.s32.totalorder %s156, %s159
      %p165 = scmp.eq.s32.totalorder %s15, 0
      %p166 = por %p164, %p165
      %p167 = scmp.ne.s32.totalorder %s156, %s159
      %p168 = scmp.eq.s32.totalorder %s20, 1
      %p169 = por %p167, %p168
      %p170 = scmp.ne.s32.totalorder %s159, %s160
      %p171 = scmp.eq.s32.totalorder %s20, 0
      %p172 = por %p170, %p171
      %p173 = scmp.ne.s32.totalorder %s159, %s160
      %p174 = scmp.eq.s32.totalorder %s21, 1
      %p175 = por %p173, %p174
      %p177 = scmp.ne.s32.totalorder %s160, %s176
      %p178 = scmp.eq.s32.totalorder %s21, 0
      %p179 = por %p177, %p178
      %p180 = scmp.le.s32.totalorder 1, %s15
      %p181 = scmp.lt.s32.totalorder %s15, 3
      %p182 = pnand %p180, %p181
      %p183 = pneg %p182
      // Predicated region
      $region9: #{mlp_positional_forward_cf.1} parent=5 // pred_check
        _
      $region10: #{mlp_positional_forward_cf.1} parent=5 // pred_check_branch
        %185 = sbr.rel (%p182) target = $region12
      $region11: #{mlp_positional_forward_cf.1} parent=5 // pred_region
        %s186 = ssub.s32 %s15, 1
        // Predicated region
        $region13: #{mlp_positional_forward_cf.1} parent=11 // pred_check
          %p187 = pneg %p62
        $region14: #{mlp_positional_forward_cf.1} parent=11 // pred_check_branch
          %189 = sbr.rel (%p187) target = $region16
        $region15: #{mlp_positional_forward_cf.1} parent=11 // pred_region
          _
        $region16: #{mlp_positional_forward_cf.1} parent=11 // pred_fallthru
          _
        // Predicated region
        $region17: #{mlp_positional_forward_cf.1} parent=11 // pred_check
          %p190 = pneg %p83
        $region18: #{mlp_positional_forward_cf.1} parent=11 // pred_check_branch
          %192 = sbr.rel (%p190) target = $region20
        $region19: #{mlp_positional_forward_cf.1} parent=11 // pred_region
          _
        $region20: #{mlp_positional_forward_cf.1} parent=11 // pred_fallthru
          _
        // Predicated region
        $region21: #{mlp_positional_forward_cf.1} parent=11 // pred_check
          %p193 = pneg %p104
        $region22: #{mlp_positional_forward_cf.1} parent=11 // pred_check_branch
          %195 = sbr.rel (%p193) target = $region24
        $region23: #{mlp_positional_forward_cf.1} parent=11 // pred_region
          _
        $region24: #{mlp_positional_forward_cf.1} parent=11 // pred_fallthru
          _
        // Predicated region
        $region25: #{mlp_positional_forward_cf.1} parent=11 // pred_check
          %p196 = pneg %p125
        $region26: #{mlp_positional_forward_cf.1} parent=11 // pred_check_branch
          %198 = sbr.rel (%p196) target = $region28
        $region27: #{mlp_positional_forward_cf.1} parent=11 // pred_region
          _
        $region28: #{mlp_positional_forward_cf.1} parent=11 // pred_fallthru
          _
        // Predicated region
        $region29: #{mlp_positional_forward_cf.1} parent=11 // pred_check
          %p199 = pneg %p146
        $region30: #{mlp_positional_forward_cf.1} parent=11 // pred_check_branch
          %201 = sbr.rel (%p199) target = $region32
        $region31: #{mlp_positional_forward_cf.1} parent=11 // pred_region
          _
        $region32: #{mlp_positional_forward_cf.1} parent=11 // pred_fallthru
          _
      $region12: #{mlp_positional_forward_cf.1} parent=5 // pred_fallthru
        _
      %p202 = scmp.lt.s32.totalorder %s15, 2
      // Predicated region
      $region33: #{mlp_positional_forward_cf.1} parent=5 // pred_check
        %p203 = pneg %p202
      $region34: #{mlp_positional_forward_cf.1} parent=5 // pred_check_branch
        %205 = sbr.rel (%p203) target = $region36
      $region35: #{mlp_positional_forward_cf.1} parent=5 // pred_region
        // Predicated region
        $region37: #{mlp_positional_forward_cf.1} parent=35 // pred_check
          %p206 = pneg %p35
        $region38: #{mlp_positional_forward_cf.1} parent=35 // pred_check_branch
          %208 = sbr.rel (%p206) target = $region40
        $region39: #{mlp_positional_forward_cf.1} parent=35 // pred_region
          %p209 = scmp.lt.s32.totalorder %s15, 1
          %s210 = scalar_select %p209, %s15, 1
          %s211 = smul.addr %s210, 2
          %s212 = scalar_lea.vmem %s0, %s211
        $region40: #{mlp_positional_forward_cf.1} parent=35 // pred_fallthru
          _
      $region36: #{mlp_positional_forward_cf.1} parent=5 // pred_fallthru
        _
      %p213 = scmp.le.s32.totalorder 1, %s15
      %p214 = scmp.lt.s32.totalorder %s15, 3
      %p215 = pnand %p213, %p214
      %p216 = pneg %p215
      // Predicated region
      $region41: #{mlp_positional_forward_cf.1} parent=5 // pred_check
        _
      $region42: #{mlp_positional_forward_cf.1} parent=5 // pred_check_branch
        %218 = sbr.rel (%p215) target = $region44
      $region43: #{mlp_positional_forward_cf.1} parent=5 // pred_region
        %s219 = ssub.s32 %s15, 1
        %p220 = scmp.lt.s32.totalorder %s20, 1
        %s221 = scalar_select %p220, %s20, 1
        %s222 = smul.addr %s221, 2
        %s223 = scalar_lea.vmem %s0, %s222
        %p224 = pneg %p41
        %p225 = pneg %p38
        %p226 = pneg %p62
        %p227 = pneg %p59
        %p228 = pneg %p83
        %p229 = pneg %p80
        %p230 = pneg %p104
        %p231 = pneg %p101
        %p232 = pneg %p125
        %p233 = pneg %p122
        %p234 = pneg %p146
        %p235 = pneg %p143
        %p236 = pneg %p172
        %p237 = pneg %p169
        %s238 = sand.u32 %s159, 1
        %s239 = scalar_lea.sflag [#allocation3], %s238
        %s240 = sand.u32 %s159, 1
        %s241 = smul.addr %s240, 4
        %s242 = scalar_lea.vmem [#allocation2], %s241
        %p243 = scmp.lt.s32.totalorder %s20, 1
        %s244 = scalar_select %p243, %s20, 1
        %s245 = smul.addr %s244, 2
        %s246 = scalar_lea.vmem %s0, %s245
        %v247 = vld [vmem:[%s246] sm:$0x3]
        %v248 = vld [vmem:[%s1] sm:$0xff]
        %v249 = vld [vmem:[%s1 + $0x8] sm:$0x3]
        %v250 = vlaneseq
        %v251 = vshrl.u32 %v250, 7
        %v252 = vsub.s32 0, %v251
        %v253 = vrot.slane %v247, %v252
        %255 = vset.pattern.permute.xlu0 0
        %256 = vperm.xlu0 %255, %v248
        %v257 = vpop.permute.xlu0 %256
        %260 = vset.pattern.permute.xlu0 0
        %261 = vperm.xlu0 %260, %v249
        %v262 = vpop.permute.xlu0 %261
        %v264 = vmul.f32 %v253, %v257
        %v265 = vmul.f32 %v253, %v262
        %v266 = vlaneseq
        %v267 = vshrl.u32 %v266, 7
        %v268 = vsub.s32 1, %v267
        %v269 = vrot.slane %v247, %v268
        %v270 = vmul.f32 %v269, %v257
        %v271 = vmul.f32 %v269, %v262
        %vm274 = vcmask 1041408
        %v275 = vrot.slane %v270, 6
        %v276 = vrot.slane %v271, 6
        %v277 = vsel %vm274, %v275, %v276
        %v280 = vsel %vm274, %v265, %v275
        %v281 = vand.u32 2147483647, %v264
        %vm282 = vcmp.le.f32.partialorder %v281, 0.7853982
        %vm283 = vcmp.lt.s32.totalorder %v264, 0
        %v284 = vand.u32 %v264, 2139095040
        %v285 = vshrl.u32 %v284, 23
        %v286 = vsub.s32 %v285, 127
        %v287 = vand.u32 2147483647, %v264
        %v288 = vand.u32 %v287, 8388607
        %v289 = vor.u32 %v288, 8388608
        %v290 = vsub.s32 0, %v289
        %v291 = vadd.s32 %v286, 1
        %vm292 = vcmp.gt.s32.totalorder %v291, 0
        %v293 = vsel %vm292, %v291, 0
        %v294 = vshrl.u32 %v293, 5
        %v295 = vand.u32 %v293, 31
        %v296 = vsub.s32 32, %v295
        %v297 = vshrl.u32 683565275, %v296
        %v298 = vshll.u32 683565275, %v295
        %v299 = vshrl.u32 2475754826, %v296
        %v300 = vor.u32 %v298, %v299
        %v301 = vshll.u32 2475754826, %v295
        %v302 = vshrl.u32 2131351028, %v296
        %v303 = vor.u32 %v301, %v302
        %v304 = vshll.u32 2131351028, %v295
        %v305 = vshrl.u32 2102212464, %v296
        %v306 = vor.u32 %v304, %v305
        %v307 = vshll.u32 2102212464, %v295
        %v308 = vshrl.u32 920167782, %v296
        %v309 = vor.u32 %v307, %v308
        %v310 = vshll.u32 920167782, %v295
        %v311 = vshrl.u32 1326507024, %v296
        %v312 = vor.u32 %v310, %v311
        %vm313 = vcmp.lt.s32.totalorder %v294, 1
        %vm314 = vcmp.lt.s32.totalorder %v294, 2
        %vm315 = vcmp.lt.s32.totalorder %v294, 3
        %vm316 = vcmp.lt.s32.totalorder %v294, 4
        %v317 = vsel %vm313, %v297, %v300
        %v318 = vsel %vm316, %v306, 2102212464
        %v319 = vsel %vm315, %v303, %v318
        %v320 = vsel %vm314, %v317, %v319
        %v321 = vsel %vm313, %v300, %v303
        %v322 = vsel %vm316, %v309, 920167782
        %v323 = vsel %vm315, %v306, %v322
        %v324 = vsel %vm314, %v321, %v323
        %v325 = vsel %vm313, %v303, %v306
        %v326 = vsel %vm316, %v312, 1326507024
        %v327 = vsel %vm315, %v309, %v326
        %v328 = vsel %vm314, %v325, %v327
        %v329 = vshll.u32 %v289, 8
        %v330 = vmul.u32.u64.compose %v329, %v328
        %v331 = vextract.low.u32 %v330
        %v332 = vextract.high.u32 %v330
        %v333 = vmul.u32.u64.compose %v329, %v324
        %v334 = vextract.low.u32 %v333
        %v335 = vextract.high.u32 %v333
        %v336 = vmul.u32 %v329, %v320
        %v337 = vadd.s32 %v332, %v334
        %vm338 = vc.u32 %v332, %v334
        %v339 = vadd.s32 %v335, 1
        %v340 = vsel %vm338, %v339, %v335
        %v341 = vadd.s32 %v336, %v340
        %v342 = vadd.s32 %v341, 536870912
        %v343 = vshrl.u32 %v342, 30
        %v344 = vshll.u32 %v343, 30
        %v345 = vsub.s32 %v341, %v344
        %vm346 = vcmp.lt.s32.totalorder %v345, 0
        %v347 = vsub.s32 0, %v345
        %v348 = vsel %vm346, %v347, %v345
        %v349 = vclz %v348
        %v350 = vsub.s32 %v349, 2
        %vm351 = vcmp.gt.s32.totalorder 0, %v350
        %v352 = vsel %vm351, 0, %v350
        %v353 = vsub.s32 32, %v352
        %v354 = vshll.u32 %v345, %v352
        %v355 = vshrl.u32 %v337, %v353
        %v356 = vor.u32 %v354, %v355
        %v357 = vsub.s32 4294967266, %v352
        %v358 = vadd.s32 %v357, 127
        %v359 = vshll.u32 %v358, 23
        %v360 = vor.u32 4788187, %v359
        %v361 = vand.u32 2147483647, %v360
        %v363 = vcvt.s32.f32 %v356
        %v364 = vmul.f32 %v363, %v361
        %v365 = vxor.u32 %v364, 2147483648
        %v366 = vsel %vm283, %v365, %v364
        %v367 = vsub.s32 4, %v343
        %v368 = vsel %vm283, %v367, %v343
        %v369 = vsel %vm282, %v264, %v366
        %v370 = vsel %vm282, 0, %v368
        %v371 = vcosq.f32.pop %v369
        %v372 = vsinq.f32.pop %v369
        %vm373 = vweird.f32 %v264
        %v374 = vadd.s32 %v370, 3
        %v375 = vand.u32 %v374, 3
        %vm376 = vcmp.lt.s32.totalorder %v375, 2
        %vm377 = vcmp.eq.s32.totalorder %v375, 0
        %v378 = vxor.u32 %v372, 2147483648
        %v379 = vsel %vm377, %v371, %v378
        %vm380 = vcmp.eq.s32.totalorder %v375, 2
        %v381 = vxor.u32 %v371, 2147483648
        %v382 = vsel %vm380, %v381, %v372
        %v383 = vsel %vm376, %v379, %v382
        %v384 = vsel %vm373, nan, %v383
        %v385 = vand.u32 2147483647, %v280
        %vm386 = vcmp.le.f32.partialorder %v385, 0.7853982
        %vm387 = vcmp.lt.s32.totalorder %v280, 0
        %v388 = vand.u32 %v280, 2139095040
        %v389 = vshrl.u32 %v388, 23
        %v390 = vsub.s32 %v389, 127
        %v391 = vand.u32 2147483647, %v280
        %v392 = vand.u32 %v391, 8388607
        %v393 = vor.u32 %v392, 8388608
        %v394 = vsub.s32 0, %v393
        %v395 = vadd.s32 %v390, 1
        %vm396 = vcmp.gt.s32.totalorder %v395, 0
        %v397 = vsel %vm396, %v395, 0
        %v398 = vshrl.u32 %v397, 5
        %v399 = vand.u32 %v397, 31
        %v400 = vsub.s32 32, %v399
        %v401 = vshrl.u32 683565275, %v400
        %v402 = vshll.u32 683565275, %v399
        %v403 = vshrl.u32 2475754826, %v400
        %v404 = vor.u32 %v402, %v403
        %v405 = vshll.u32 2475754826, %v399
        %v406 = vshrl.u32 2131351028, %v400
        %v407 = vor.u32 %v405, %v406
        %v408 = vshll.u32 2131351028, %v399
        %v409 = vshrl.u32 2102212464, %v400
        %v410 = vor.u32 %v408, %v409
        %v411 = vshll.u32 2102212464, %v399
        %v412 = vshrl.u32 920167782, %v400
        %v413 = vor.u32 %v411, %v412
        %v414 = vshll.u32 920167782, %v399
        %v415 = vshrl.u32 1326507024, %v400
        %v416 = vor.u32 %v414, %v415
        %vm417 = vcmp.lt.s32.totalorder %v398, 1
        %vm418 = vcmp.lt.s32.totalorder %v398, 2
        %vm419 = vcmp.lt.s32.totalorder %v398, 3
        %vm420 = vcmp.lt.s32.totalorder %v398, 4
        %v421 = vsel %vm417, %v401, %v404
        %v422 = vsel %vm420, %v410, 2102212464
        %v423 = vsel %vm419, %v407, %v422
        %v424 = vsel %vm418, %v421, %v423
        %v425 = vsel %vm417, %v404, %v407
        %v426 = vsel %vm420, %v413, 920167782
        %v427 = vsel %vm419, %v410, %v426
        %v428 = vsel %vm418, %v425, %v427
        %v429 = vsel %vm417, %v407, %v410
        %v430 = vsel %vm420, %v416, 1326507024
        %v431 = vsel %vm419, %v413, %v430
        %v432 = vsel %vm418, %v429, %v431
        %v433 = vshll.u32 %v393, 8
        %v434 = vmul.u32.u64.compose %v433, %v432
        %v435 = vextract.low.u32 %v434
        %v436 = vextract.high.u32 %v434
        %v437 = vmul.u32.u64.compose %v433, %v428
        %v438 = vextract.low.u32 %v437
        %v439 = vextract.high.u32 %v437
        %v440 = vmul.u32 %v433, %v424
        %v441 = vadd.s32 %v436, %v438
        %vm442 = vc.u32 %v436, %v438
        %v443 = vadd.s32 %v439, 1
        %v444 = vsel %vm442, %v443, %v439
        %v445 = vadd.s32 %v440, %v444
        %v446 = vadd.s32 %v445, 536870912
        %v447 = vshrl.u32 %v446, 30
        %v448 = vshll.u32 %v447, 30
        %v449 = vsub.s32 %v445, %v448
        %vm450 = vcmp.lt.s32.totalorder %v449, 0
        %v451 = vsub.s32 0, %v449
        %v452 = vsel %vm450, %v451, %v449
        %v453 = vclz %v452
        %v454 = vsub.s32 %v453, 2
        %vm455 = vcmp.gt.s32.totalorder 0, %v454
        %v456 = vsel %vm455, 0, %v454
        %v457 = vsub.s32 32, %v456
        %v458 = vshll.u32 %v449, %v456
        %v459 = vshrl.u32 %v441, %v457
        %v460 = vor.u32 %v458, %v459
        %v461 = vsub.s32 4294967266, %v456
        %v462 = vadd.s32 %v461, 127
        %v463 = vshll.u32 %v462, 23
        %v464 = vor.u32 4788187, %v463
        %v465 = vand.u32 2147483647, %v464
        %v467 = vcvt.s32.f32 %v460
        %v468 = vmul.f32 %v467, %v465
        %v469 = vxor.u32 %v468, 2147483648
        %v470 = vsel %vm387, %v469, %v468
        %v471 = vsub.s32 4, %v447
        %v472 = vsel %vm387, %v471, %v447
        %v473 = vsel %vm386, %v280, %v470
        %v474 = vsel %vm386, 0, %v472
        %v475 = vcosq.f32.pop %v473
        %v476 = vsinq.f32.pop %v473
        %vm477 = vweird.f32 %v280
        %v478 = vadd.s32 %v474, 3
        %v479 = vand.u32 %v478, 3
        %vm480 = vcmp.lt.s32.totalorder %v479, 2
        %vm481 = vcmp.eq.s32.totalorder %v479, 0
        %v482 = vxor.u32 %v476, 2147483648
        %v483 = vsel %vm481, %v475, %v482
        %vm484 = vcmp.eq.s32.totalorder %v479, 2
        %v485 = vxor.u32 %v475, 2147483648
        %v486 = vsel %vm484, %v485, %v476
        %v487 = vsel %vm480, %v483, %v486
        %v488 = vsel %vm477, nan, %v487
        %v489 = vand.u32 2147483647, %v277
        %vm490 = vcmp.le.f32.partialorder %v489, 0.7853982
        %vm491 = vcmp.lt.s32.totalorder %v277, 0
        %v492 = vand.u32 %v277, 2139095040
        %v493 = vshrl.u32 %v492, 23
        %v494 = vsub.s32 %v493, 127
        %v495 = vand.u32 2147483647, %v277
        %v496 = vand.u32 %v495, 8388607
        %v497 = vor.u32 %v496, 8388608
        %v498 = vsub.s32 0, %v497
        %v499 = vadd.s32 %v494, 1
        %vm500 = vcmp.gt.s32.totalorder %v499, 0
        %v501 = vsel %vm500, %v499, 0
        %v502 = vshrl.u32 %v501, 5
        %v503 = vand.u32 %v501, 31
        %v504 = vsub.s32 32, %v503
        %v505 = vshrl.u32 683565275, %v504
        %v506 = vshll.u32 683565275, %v503
        %v507 = vshrl.u32 2475754826, %v504
        %v508 = vor.u32 %v506, %v507
        %v509 = vshll.u32 2475754826, %v503
        %v510 = vshrl.u32 2131351028, %v504
        %v511 = vor.u32 %v509, %v510
        %v512 = vshll.u32 2131351028, %v503
        %v513 = vshrl.u32 2102212464, %v504
        %v514 = vor.u32 %v512, %v513
        %v515 = vshll.u32 2102212464, %v503
        %v516 = vshrl.u32 920167782, %v504
        %v517 = vor.u32 %v515, %v516
        %v518 = vshll.u32 920167782, %v503
        %v519 = vshrl.u32 1326507024, %v504
        %v520 = vor.u32 %v518, %v519
        %vm521 = vcmp.lt.s32.totalorder %v502, 1
        %vm522 = vcmp.lt.s32.totalorder %v502, 2
        %vm523 = vcmp.lt.s32.totalorder %v502, 3
        %vm524 = vcmp.lt.s32.totalorder %v502, 4
        %v525 = vsel %vm521, %v505, %v508
        %v526 = vsel %vm524, %v514, 2102212464
        %v527 = vsel %vm523, %v511, %v526
        %v528 = vsel %vm522, %v525, %v527
        %v529 = vsel %vm521, %v508, %v511
        %v530 = vsel %vm524, %v517, 920167782
        %v531 = vsel %vm523, %v514, %v530
        %v532 = vsel %vm522, %v529, %v531
        %v533 = vsel %vm521, %v511, %v514
        %v534 = vsel %vm524, %v520, 1326507024
        %v535 = vsel %vm523, %v517, %v534
        %v536 = vsel %vm522, %v533, %v535
        %v537 = vshll.u32 %v497, 8
        %v538 = vmul.u32.u64.compose %v537, %v536
        %v539 = vextract.low.u32 %v538
        %v540 = vextract.high.u32 %v538
        %v541 = vmul.u32.u64.compose %v537, %v532
        %v542 = vextract.low.u32 %v541
        %v543 = vextract.high.u32 %v541
        %v544 = vmul.u32 %v537, %v528
        %v545 = vadd.s32 %v540, %v542
        %vm546 = vc.u32 %v540, %v542
        %v547 = vadd.s32 %v543, 1
        %v548 = vsel %vm546, %v547, %v543
        %v549 = vadd.s32 %v544, %v548
        %v550 = vadd.s32 %v549, 536870912
        %v551 = vshrl.u32 %v550, 30
        %v552 = vshll.u32 %v551, 30
        %v553 = vsub.s32 %v549, %v552
        %vm554 = vcmp.lt.s32.totalorder %v553, 0
        %v555 = vsub.s32 0, %v553
        %v556 = vsel %vm554, %v555, %v553
        %v557 = vclz %v556
        %v558 = vsub.s32 %v557, 2
        %vm559 = vcmp.gt.s32.totalorder 0, %v558
        %v560 = vsel %vm559, 0, %v558
        %v561 = vsub.s32 32, %v560
        %v562 = vshll.u32 %v553, %v560
        %v563 = vshrl.u32 %v545, %v561
        %v564 = vor.u32 %v562, %v563
        %v565 = vsub.s32 4294967266, %v560
        %v566 = vadd.s32 %v565, 127
        %v567 = vshll.u32 %v566, 23
        %v568 = vor.u32 4788187, %v567
        %v569 = vand.u32 2147483647, %v568
        %v571 = vcvt.s32.f32 %v564
        %v572 = vmul.f32 %v571, %v569
        %v573 = vxor.u32 %v572, 2147483648
        %v574 = vsel %vm491, %v573, %v572
        %v575 = vsub.s32 4, %v551
        %v576 = vsel %vm491, %v575, %v551
        %v577 = vsel %vm490, %v277, %v574
        %v578 = vsel %vm490, 0, %v576
        %v579 = vcosq.f32.pop %v577
        %v580 = vsinq.f32.pop %v577
        %vm581 = vweird.f32 %v277
        %v582 = vadd.s32 %v578, 3
        %v583 = vand.u32 %v582, 3
        %vm584 = vcmp.lt.s32.totalorder %v583, 2
        %vm585 = vcmp.eq.s32.totalorder %v583, 0
        %v586 = vxor.u32 %v580, 2147483648
        %v587 = vsel %vm585, %v579, %v586
        %vm588 = vcmp.eq.s32.totalorder %v583, 2
        %v589 = vxor.u32 %v579, 2147483648
        %v590 = vsel %vm588, %v589, %v580
        %v591 = vsel %vm584, %v587, %v590
        %v592 = vsel %vm581, nan, %v591
        %v594 = vrot.slane %v247, 4
        %vm596 = vcmask 1043456
        %v597 = vsel %vm596, %v592, %v594
        %v598 = vld [vmem:[%s2] sm:$0xff]
        %v599 = vld [vmem:[%s2 + $0x8] sm:$0xff]
        %v600 = vld [vmem:[%s2 + $0x10] sm:$0xff]
        %v601 = vld [vmem:[%s2 + $0x18] sm:$0xff]
        %v602 = vld [vmem:[%s2 + $0x20] sm:$0xff]
        %v603 = vld [vmem:[%s2 + $0x28] sm:$0xff]
        %v604 = vld [vmem:[%s2 + $0x30] sm:$0xff]
        %v605 = vld [vmem:[%s2 + $0x38] sm:$0xff]
        %v606 = vld [vmem:[%s2 + $0x40] sm:$0xff]
        %v607 = vld [vmem:[%s2 + $0x48] sm:$0xff]
        %v608 = vld [vmem:[%s2 + $0x50] sm:$0xff]
        %v609 = vld [vmem:[%s2 + $0x58] sm:$0xff]
        %v610 = vld [vmem:[%s2 + $0x60] sm:$0xff]
        %v611 = vld [vmem:[%s2 + $0x68] sm:$0xff]
        %v612 = vld [vmem:[%s2 + $0x70] sm:$0xff]
        %v613 = vld [vmem:[%s2 + $0x78] sm:$0xff]
        %v614 = vld [vmem:[%s3] sm:$0xff]
        %v615 = vld [vmem:[%s3 + $0x8] sm:$0xff]
        %v616 = vld [vmem:[%s3 + $0x10] sm:$0xff]
        %v617 = vld [vmem:[%s3 + $0x18] sm:$0xff]
        %v618 = vld [vmem:[%s3 + $0x20] sm:$0xff]
        %v619 = vld [vmem:[%s3 + $0x28] sm:$0xff]
        %v620 = vld [vmem:[%s3 + $0x30] sm:$0xff]
        %v621 = vld [vmem:[%s3 + $0x38] sm:$0xff]
        %v622 = vld [vmem:[%s3 + $0x40] sm:$0xff]
        %v623 = vld [vmem:[%s3 + $0x48] sm:$0xff]
        %v624 = vld [vmem:[%s3 + $0x50] sm:$0xff]
        %v625 = vld [vmem:[%s3 + $0x58] sm:$0xff]
        %v626 = vld [vmem:[%s3 + $0x60] sm:$0xff]
        %v627 = vld [vmem:[%s3 + $0x68] sm:$0xff]
        %v628 = vld [vmem:[%s3 + $0x70] sm:$0xff]
        %v629 = vld [vmem:[%s3 + $0x78] sm:$0xff]
        %631 = vset.pattern.permute.xlu0 0
        %632 = vperm.xlu0 %631, %v614
        %v633 = vpop.permute.xlu0 %632
        %636 = vset.pattern.permute.xlu0 0
        %637 = vperm.xlu0 %636, %v615
        %v638 = vpop.permute.xlu0 %637
        %641 = vset.pattern.permute.xlu0 0
        %642 = vperm.xlu0 %641, %v616
        %v643 = vpop.permute.xlu0 %642
        %646 = vset.pattern.permute.xlu0 0
        %647 = vperm.xlu0 %646, %v617
        %v648 = vpop.permute.xlu0 %647
        %651 = vset.pattern.permute.xlu0 0
        %652 = vperm.xlu0 %651, %v618
        %v653 = vpop.permute.xlu0 %652
        %656 = vset.pattern.permute.xlu0 0
        %657 = vperm.xlu0 %656, %v619
        %v658 = vpop.permute.xlu0 %657
        %661 = vset.pattern.permute.xlu0 0
        %662 = vperm.xlu0 %661, %v620
        %v663 = vpop.permute.xlu0 %662
        %666 = vset.pattern.permute.xlu0 0
        %667 = vperm.xlu0 %666, %v621
        %v668 = vpop.permute.xlu0 %667
        %671 = vset.pattern.permute.xlu0 0
        %672 = vperm.xlu0 %671, %v622
        %v673 = vpop.permute.xlu0 %672
        %676 = vset.pattern.permute.xlu0 0
        %677 = vperm.xlu0 %676, %v623
        %v678 = vpop.permute.xlu0 %677
        %681 = vset.pattern.permute.xlu0 0
        %682 = vperm.xlu0 %681, %v624
        %v683 = vpop.permute.xlu0 %682
        %686 = vset.pattern.permute.xlu0 0
        %687 = vperm.xlu0 %686, %v625
        %v688 = vpop.permute.xlu0 %687
        %691 = vset.pattern.permute.xlu0 0
        %692 = vperm.xlu0 %691, %v626
        %v693 = vpop.permute.xlu0 %692
        %696 = vset.pattern.permute.xlu0 0
        %697 = vperm.xlu0 %696, %v627
        %v698 = vpop.permute.xlu0 %697
        %701 = vset.pattern.permute.xlu0 0
        %702 = vperm.xlu0 %701, %v628
        %v703 = vpop.permute.xlu0 %702
        %706 = vset.pattern.permute.xlu0 0
        %707 = vperm.xlu0 %706, %v629
        %v708 = vpop.permute.xlu0 %707
        %vm710 = vcmask 179200
        %v712 = vsel %vm710, %v598, 0
        %v715 = vsel %vm710, %v599, 0
        %v718 = vsel %vm710, %v600, 0
        %v721 = vsel %vm710, %v601, 0
        %v724 = vsel %vm710, %v602, 0
        %v727 = vsel %vm710, %v603, 0
        %v730 = vsel %vm710, %v604, 0
        %v733 = vsel %vm710, %v605, 0
        %v736 = vsel %vm710, %v606, 0
        %v739 = vsel %vm710, %v607, 0
        %v742 = vsel %vm710, %v608, 0
        %v745 = vsel %vm710, %v609, 0
        %v748 = vsel %vm710, %v610, 0
        %v751 = vsel %vm710, %v611, 0
        %v754 = vsel %vm710, %v612, 0
        %v757 = vsel %vm710, %v613, 0
        %vm759 = vcmask 1045504
        %v761 = vsel %vm759, %v597, 0
        %763 = vmatprep.subr.mxu0 0.0
        %764 = vmatpush1.msra.mxu0 0.0
        %765 = vmatprep.subr.mxu0 0.0
        %766 = vmatpush1.msra.mxu0 0.0
        %767 = vmatprep.subr.mxu0 0.0
        %768 = vmatpush1.msra.mxu0 0.0
        %769 = vmatprep.subr.mxu0 0.0
        %770 = vmatpush1.msra.mxu0 0.0
        %771 = vmatprep.subr.mxu0 0.0
        %772 = vmatpush1.msra.mxu0 0.0
        %773 = vmatprep.subr.mxu0 0.0
        %774 = vmatpush1.msra.mxu0 0.0
        %775 = vmatprep.subr.mxu0 0.0
        %776 = vmatpush1.msra.mxu0 0.0
        %777 = vmatprep.subr.mxu0 0.0
        %778 = vmatpush1.msra.mxu0 0.0
        %779 = vmatprep.subr.mxu0 0.0
        %780 = vmatpush1.msra.mxu0 0.0
        %781 = vmatprep.subr.mxu0 0.0
        %782 = vmatpush1.msra.mxu0 0.0
        %783 = vmatprep.subr.mxu0 0.0
        %784 = vmatpush1.msra.mxu0 0.0
        %785 = vmatprep.subr.mxu0 0.0
        %786 = vmatpush1.msra.mxu0 0.0
        %787 = vmatprep.subr.mxu0 0.0
        %788 = vmatpush1.msra.mxu0 0.0
        %789 = vmatprep.subr.mxu0 0.0
        %790 = vmatpush1.msra.mxu0 %v761
        %791 = vmatprep.subr.mxu0 0.0
        %792 = vmatpush1.msra.mxu0 %v488
        %793 = vmatprep.subr.mxu0 0.0
        %794 = vmatpush1.msra.mxu0 %v384
        %795 = vmatprep.subr.mxu0 0.0
        %796 = vmatpush2.msra.mxu0 0.0
        %797 = vmatprep.subr.mxu0 0.0
        %798 = vmatpush2.msra.mxu0 0.0
        %799 = vmatprep.subr.mxu0 0.0
        %800 = vmatpush2.msra.mxu0 0.0
        %801 = vmatprep.subr.mxu0 0.0
        %802 = vmatpush2.msra.mxu0 0.0
        %803 = vmatprep.subr.mxu0 0.0
        %804 = vmatpush2.msra.mxu0 0.0
        %805 = vmatprep.subr.mxu0 0.0
        %806 = vmatpush2.msra.mxu0 0.0
        %807 = vmatprep.subr.mxu0 0.0
        %808 = vmatpush2.msra.mxu0 0.0
        %809 = vmatprep.subr.mxu0 0.0
        %810 = vmatpush2.msra.mxu0 0.0
        %811 = vmatprep.subr.mxu0 0.0
        %812 = vmatpush2.msra.mxu0 0.0
        %813 = vmatprep.subr.mxu0 0.0
        %814 = vmatpush2.msra.mxu0 0.0
        %815 = vmatprep.subr.mxu0 0.0
        %816 = vmatpush2.msra.mxu0 0.0
        %817 = vmatprep.subr.mxu0 0.0
        %818 = vmatpush2.msra.mxu0 0.0
        %819 = vmatprep.subr.mxu0 0.0
        %820 = vmatpush2.msra.mxu0 0.0
        %821 = vmatprep.subr.mxu0 0.0
        %822 = vmatpush2.msra.mxu0 0.0
        %823 = vmatprep.subr.mxu0 0.0
        %824 = vmatpush2.msra.mxu0 0.0
        %825 = vmatprep.subr.mxu0 0.0
        %826 = vmatpush2.msra.mxu0 0.0
        %827 = vmatprep.mubr.f32.mxu0 0.0
        %828 = vmatmul.mubr.f32.gmra.mxu0 %v712
        %v829 = vpop.f32.mrf.mxu0
        %v830 = vadd.f32 %v633, %v829
        %v831 = vpop.f32.mrf.mxu0
        %832 = vmatprep.mubr.f32.mxu0 0.0
        %833 = vmatmul.mubr.f32.gmra.mxu0 %v715
        %v834 = vpop.f32.mrf.mxu0
        %v835 = vadd.f32 %v638, %v834
        %v836 = vpop.f32.mrf.mxu0
        %837 = vmatprep.mubr.f32.mxu0 0.0
        %838 = vmatmul.mubr.f32.gmra.mxu0 %v718
        %v839 = vpop.f32.mrf.mxu0
        %v840 = vadd.f32 %v643, %v839
        %v841 = vpop.f32.mrf.mxu0
        %842 = vmatprep.mubr.f32.mxu0 0.0
        %843 = vmatmul.mubr.f32.gmra.mxu0 %v721
        %v844 = vpop.f32.mrf.mxu0
        %v845 = vadd.f32 %v648, %v844
        %v846 = vpop.f32.mrf.mxu0
        %847 = vmatprep.mubr.f32.mxu0 0.0
        %848 = vmatmul.mubr.f32.gmra.mxu0 %v724
        %v849 = vpop.f32.mrf.mxu0
        %v850 = vadd.f32 %v653, %v849
        %v851 = vpop.f32.mrf.mxu0
        %852 = vmatprep.mubr.f32.mxu0 0.0
        %853 = vmatmul.mubr.f32.gmra.mxu0 %v727
        %v854 = vpop.f32.mrf.mxu0
        %v855 = vadd.f32 %v658, %v854
        %v856 = vpop.f32.mrf.mxu0
        %857 = vmatprep.mubr.f32.mxu0 0.0
        %858 = vmatmul.mubr.f32.gmra.mxu0 %v730
        %v859 = vpop.f32.mrf.mxu0
        %v860 = vadd.f32 %v663, %v859
        %v861 = vpop.f32.mrf.mxu0
        %862 = vmatprep.mubr.f32.mxu0 0.0
        %863 = vmatmul.mubr.f32.gmra.mxu0 %v733
        %v864 = vpop.f32.mrf.mxu0
        %v865 = vadd.f32 %v668, %v864
        %v866 = vpop.f32.mrf.mxu0
        %867 = vmatprep.mubr.f32.mxu0 0.0
        %868 = vmatmul.mubr.f32.gmra.mxu0 %v736
        %v869 = vpop.f32.mrf.mxu0
        %v870 = vadd.f32 %v673, %v869
        %v871 = vpop.f32.mrf.mxu0
        %872 = vmatprep.mubr.f32.mxu0 0.0
        %873 = vmatmul.mubr.f32.gmra.mxu0 %v739
        %v874 = vpop.f32.mrf.mxu0
        %v875 = vadd.f32 %v678, %v874
        %v876 = vpop.f32.mrf.mxu0
        %877 = vmatprep.mubr.f32.mxu0 0.0
        %878 = vmatmul.mubr.f32.gmra.mxu0 %v742
        %v879 = vpop.f32.mrf.mxu0
        %v880 = vadd.f32 %v683, %v879
        %v881 = vpop.f32.mrf.mxu0
        %882 = vmatprep.mubr.f32.mxu0 0.0
        %883 = vmatmul.mubr.f32.gmra.mxu0 %v745
        %v884 = vpop.f32.mrf.mxu0
        %v885 = vadd.f32 %v688, %v884
        %v886 = vpop.f32.mrf.mxu0
        %887 = vmatprep.mubr.f32.mxu0 0.0
        %888 = vmatmul.mubr.f32.gmra.mxu0 %v748
        %v889 = vpop.f32.mrf.mxu0
        %v890 = vadd.f32 %v693, %v889
        %v891 = vpop.f32.mrf.mxu0
        %892 = vmatprep.mubr.f32.mxu0 0.0
        %893 = vmatmul.mubr.f32.gmra.mxu0 %v751
        %v894 = vpop.f32.mrf.mxu0
        %v895 = vadd.f32 %v698, %v894
        %v896 = vpop.f32.mrf.mxu0
        %897 = vmatprep.mubr.f32.mxu0 0.0
        %898 = vmatmul.mubr.f32.gmra.mxu0 %v754
        %v899 = vpop.f32.mrf.mxu0
        %v900 = vadd.f32 %v703, %v899
        %v901 = vpop.f32.mrf.mxu0
        %902 = vmatprep.mubr.f32.mxu0 0.0
        %903 = vmatmul.mubr.f32.gmra.mxu0 %v757
        %v904 = vpop.f32.mrf.mxu0
        %v905 = vadd.f32 %v708, %v904
        %v906 = vpop.f32.mrf.mxu0
        %907 = vdwg.mxu0
        %v908 = vmax.f32 %v830, 0.0
        %v909 = vmax.f32 %v835, 0.0
        %v910 = vmax.f32 %v840, 0.0
        %v911 = vmax.f32 %v845, 0.0
        %v912 = vmax.f32 %v850, 0.0
        %v913 = vmax.f32 %v855, 0.0
        %v914 = vmax.f32 %v860, 0.0
        %v915 = vmax.f32 %v865, 0.0
        %v916 = vmax.f32 %v870, 0.0
        %v917 = vmax.f32 %v875, 0.0
        %v918 = vmax.f32 %v880, 0.0
        %v919 = vmax.f32 %v885, 0.0
        %v920 = vmax.f32 %v890, 0.0
        %v921 = vmax.f32 %v895, 0.0
        %v922 = vmax.f32 %v900, 0.0
        %v923 = vmax.f32 %v905, 0.0
        %v924 = vld [vmem:[%s4] sm:$0x7]
        %v925 = vld [vmem:[%s5] sm:$0x7]
        %927 = vset.pattern.permute.xlu0 0
        %928 = vperm.xlu0 %927, %v925
        %v929 = vpop.permute.xlu0 %928
        %931 = vmatprep.subr.mxu0 0.0
        %932 = vmatpush1.msra.mxu0 %v923
        %933 = vmatprep.subr.mxu0 0.0
        %934 = vmatpush1.msra.mxu0 %v922
        %935 = vmatprep.subr.mxu0 0.0
        %936 = vmatpush1.msra.mxu0 %v921
        %937 = vmatprep.subr.mxu0 0.0
        %938 = vmatpush1.msra.mxu0 %v920
        %939 = vmatprep.subr.mxu0 0.0
        %940 = vmatpush1.msra.mxu0 %v919
        %941 = vmatprep.subr.mxu0 0.0
        %942 = vmatpush1.msra.mxu0 %v918
        %943 = vmatprep.subr.mxu0 0.0
        %944 = vmatpush1.msra.mxu0 %v917
        %945 = vmatprep.subr.mxu0 0.0
        %946 = vmatpush1.msra.mxu0 %v916
        %947 = vmatprep.subr.mxu0 0.0
        %948 = vmatpush1.msra.mxu0 %v915
        %949 = vmatprep.subr.mxu0 0.0
        %950 = vmatpush1.msra.mxu0 %v914
        %951 = vmatprep.subr.mxu0 0.0
        %952 = vmatpush1.msra.mxu0 %v913
        %953 = vmatprep.subr.mxu0 0.0
        %954 = vmatpush1.msra.mxu0 %v912
        %955 = vmatprep.subr.mxu0 0.0
        %956 = vmatpush1.msra.mxu0 %v911
        %957 = vmatprep.subr.mxu0 0.0
        %958 = vmatpush1.msra.mxu0 %v910
        %959 = vmatprep.subr.mxu0 0.0
        %960 = vmatpush1.msra.mxu0 %v909
        %961 = vmatprep.subr.mxu0 0.0
        %962 = vmatpush1.msra.mxu0 %v908
        %963 = vmatprep.subr.mxu0 0.0
        %964 = vmatpush2.msra.mxu0 0.0
        %965 = vmatprep.subr.mxu0 0.0
        %966 = vmatpush2.msra.mxu0 0.0
        %967 = vmatprep.subr.mxu0 0.0
        %968 = vmatpush2.msra.mxu0 0.0
        %969 = vmatprep.subr.mxu0 0.0
        %970 = vmatpush2.msra.mxu0 0.0
        %971 = vmatprep.subr.mxu0 0.0
        %972 = vmatpush2.msra.mxu0 0.0
        %973 = vmatprep.subr.mxu0 0.0
        %974 = vmatpush2.msra.mxu0 0.0
        %975 = vmatprep.subr.mxu0 0.0
        %976 = vmatpush2.msra.mxu0 0.0
        %977 = vmatprep.subr.mxu0 0.0
        %978 = vmatpush2.msra.mxu0 0.0
        %979 = vmatprep.subr.mxu0 0.0
        %980 = vmatpush2.msra.mxu0 0.0
        %981 = vmatprep.subr.mxu0 0.0
        %982 = vmatpush2.msra.mxu0 0.0
        %983 = vmatprep.subr.mxu0 0.0
        %984 = vmatpush2.msra.mxu0 0.0
        %985 = vmatprep.subr.mxu0 0.0
        %986 = vmatpush2.msra.mxu0 0.0
        %987 = vmatprep.subr.mxu0 0.0
        %988 = vmatpush2.msra.mxu0 0.0
        %989 = vmatprep.subr.mxu0 0.0
        %990 = vmatpush2.msra.mxu0 0.0
        %991 = vmatprep.subr.mxu0 0.0
        %992 = vmatpush2.msra.mxu0 0.0
        %993 = vmatprep.subr.mxu0 0.0
        %994 = vmatpush2.msra.mxu0 0.0
        %995 = vmatprep.mubr.f32.mxu0 0.0
        %996 = vmatmul.mubr.f32.gmra.mxu0 %v924
        %v997 = vpop.f32.mrf.mxu0
        %v998 = vadd.f32 %v929, %v997
        %v999 = vpop.f32.mrf.mxu0
        %1000 = vdwg.mxu0
        %v1001 = vmul.f32 %v998, 0.5
        %v1002 = vtanh.pop %v1001
        %v1003 = vadd.f32 %v1002, 1.0
        %v1004 = vmul.f32 %v1003, 0.5
        %1005 = vst [vmem:[%s242] sm:$0x7] %v1004
        %s1006 = sand.u32 %s159, 1
        %s1007 = scalar_lea.sflag [#allocation3], %s1006
        %s1008 = sand.u32 %s159, 1
        %s1009 = smul.addr %s1008, 4
        %s1010 = scalar_lea.vmem [#allocation2], %s1009
        // Predicated region
        $region45: #{mlp_positional_forward_cf.1} parent=43 // pred_check
          %p1011 = pneg %p169
        $region46: #{mlp_positional_forward_cf.1} parent=43 // pred_check_branch
          %1013 = sbr.rel (%p1011) target = $region48
        $region47: #{mlp_positional_forward_cf.1} parent=43 // pred_region
          %s1015 = ssub.s32 64, 64
          %1016 = vsyncadd %s1007, %s1015
          %s1017 = smul.addr %s20, 64
          %s1018 = scalar_lea.hbm %s6, %s1017
          %s1020 = sshll.u32 %s1010, 4
          %s1021 = int_to_ptr.vmem [resolvable:$true] %s1020
          %1023 = dma.vmem_to_hbm [thread:$0]  %s1021, 64, %s1018, %s1007
        $region48: #{mlp_positional_forward_cf.1} parent=43 // pred_fallthru
          _
      $region44: #{mlp_positional_forward_cf.1} parent=5 // pred_fallthru
        _
      %p1024 = scmp.le.s32.totalorder 2, %s15
      // Predicated region
      $region49: #{mlp_positional_forward_cf.1} parent=5 // pred_check
        %p1025 = pneg %p1024
      $region50: #{mlp_positional_forward_cf.1} parent=5 // pred_check_branch
        %1027 = sbr.rel (%p1025) target = $region52
      $region51: #{mlp_positional_forward_cf.1} parent=5 // pred_region
        %s1028 = ssub.s32 %s15, 2
        // Predicated region
        $region53: #{mlp_positional_forward_cf.1} parent=51 // pred_check
          %p1029 = pneg %p175
        $region54: #{mlp_positional_forward_cf.1} parent=51 // pred_check_branch
          %1031 = sbr.rel (%p1029) target = $region56
        $region55: #{mlp_positional_forward_cf.1} parent=51 // pred_region
          %s1032 = sand.u32 %s160, 1
          %s1033 = scalar_lea.sflag [#allocation3], %s1032
          %s1034 = sand.u32 %s160, 1
          %s1035 = smul.addr %s1034, 4
          %s1036 = scalar_lea.vmem [#allocation2], %s1035
          %1037 = dma.done %s1033, 64
        $region56: #{mlp_positional_forward_cf.1} parent=51 // pred_fallthru
          _
      $region52: #{mlp_positional_forward_cf.1} parent=5 // pred_fallthru
        _
    $region6: #{mlp_positional_forward_cf.1} parent=1 // loop_footer
      %s19 = sadd.s32 1, %s15
    $region7: #{mlp_positional_forward_cf.1} parent=1 // loop_footer_branch
      %14 = sbr.rel target = $region3
    $region8: #{mlp_positional_forward_cf.1} parent=1 // loop_exit
      _
    %1038 = vsyncpa [#allocation3], 1
    %s1039 = scalar_lea.sflag [#allocation3], 1
    %1040 = vsyncpa %s1039, 1

</llo_original>
